<compile_context>
chip_gen: v5e
topology: v5e:2x2
jax: 0.10.0
libtpu: 0.0.40
codegen_flags: <defaults>
</compile_context>

<pallas_src>
import functools

import jax
import jax.numpy as jnp
from jax.experimental import pallas as pl
from jax.experimental.pallas import tpu as pltpu

_LANE = 128
_SUBLANE = 8
_LANE_DENSE_THRESHOLD = 64   # use the lane-dense [C, B] layout when C < this


def _round_up(x, m):
    return ((x + m - 1) // m) * m


# ----------------------------------------------------------------------------
# Kernels
# ----------------------------------------------------------------------------
def _cw_rows_kernel(logits_ref, targets_ref, out_ref, *,
                    margin, batch, tile_b, tiles_per_part, compute_dtype):
    """[B, C] layout: batch rows on sublanes, classes on lanes."""
    p = pl.program_id(0)          # optional multi-TensorCore split ("parallel")
    j = pl.program_id(1)          # batch-tile reduction axis ("arbitrary")

    @pl.when(j == 0)
    def _():
        out_ref[0, 0] = jnp.float32(0.0)

    logits = logits_ref[...].astype(compute_dtype)        # [tb, C]
    targets = targets_ref[...]                            # [tb, 1] int32
    tb, num_classes = logits.shape

    class_ids = jax.lax.broadcasted_iota(jnp.int32, (tb, num_classes), 1)
    is_target = class_ids == targets                       # [tb, C] bool

    zero = jnp.asarray(0.0, dtype=compute_dtype)
    sentinel = jnp.asarray(-1000.0, dtype=compute_dtype)

    # self_loss  = sum(onehot * logits)      (single nonzero term -> exact)
    self_loss = jnp.sum(jnp.where(is_target, logits, zero),
                        axis=1, keepdims=True).astype(jnp.float32)
    # other_loss = max((1-onehot)*logits - onehot*1000)  (target col == -1000)
    other_loss = jnp.max(jnp.where(is_target, sentinel, logits),
                         axis=1, keepdims=True).astype(jnp.float32)

    per_sample = jnp.maximum(self_loss - other_loss + margin, 0.0)

    # Rows past the true batch (partial last tile / clamped tiles when
    # num_parts > 1) carry uninitialised data; a true select discards it safely
    # even if it is NaN/Inf.  Uses the *unclamped* global tile index while the
    # index_map clamps — intentional, keep them in sync.
    global_tile = p * tiles_per_part + j
    row_ids = global_tile * tile_b + jax.lax.broadcasted_iota(
        jnp.int32, (tb, 1), 0)
    per_sample = jnp.where(row_ids < batch, per_sample, 0.0)

    out_ref[0, 0] += jnp.sum(per_sample)


def _cw_cols_kernel(logits_ref, targets_ref, out_ref, *,
                    margin, batch, tile_n, tiles_per_part, compute_dtype):
    """Lane-dense [C, B] layout: classes on sublanes, samples on lanes."""
    p = pl.program_id(0)
    j = pl.program_id(1)

    @pl.when(j == 0)
    def _():
        out_ref[0, 0] = jnp.float32(0.0)

    logits = logits_ref[...].astype(compute_dtype)         # [C, tn]
    targets = targets_ref[...]                             # [1, tn] int32
    num_classes, tn = logits.shape

    class_ids = jax.lax.broadcasted_iota(jnp.int32, (num_classes, tn), 0)
    is_target = class_ids == targets                        # [C, tn] bool

    zero = jnp.asarray(0.0, dtype=compute_dtype)
    sentinel = jnp.asarray(-1000.0, dtype=compute_dtype)

    self_loss = jnp.sum(jnp.where(is_target, logits, zero),
                        axis=0, keepdims=True).astype(jnp.float32)    # [1, tn]
    other_loss = jnp.max(jnp.where(is_target, sentinel, logits),
                         axis=0, keepdims=True).astype(jnp.float32)   # [1, tn]

    per_sample = jnp.maximum(self_loss - other_loss + margin, 0.0)

    global_tile = p * tiles_per_part + j
    col_ids = global_tile * tile_n + jax.lax.broadcasted_iota(
        jnp.int32, (1, tn), 1)
    per_sample = jnp.where(col_ids < batch, per_sample, 0.0)

    out_ref[0, 0] += jnp.sum(per_sample)


# ----------------------------------------------------------------------------
# Heuristics
# ----------------------------------------------------------------------------
def _pick_rows_tile(batch, num_classes, in_isz, cmp_isz, budget_bytes=8 << 20):
    """Rows per tile for the [B, C] layout.

    Budgets the *padded* per-step working set: native input block (x2 for the
    pipeline double buffer) + ~2 compute-width temporaries, all padded to 128
    lanes.  Byte-capped only (no fixed row cap)."""
    lanes = _round_up(num_classes, _LANE)
    per_row = lanes * (2 * in_isz + 2 * cmp_isz)
    rows = budget_bytes // max(per_row, 1)
    rows = max(32, (rows // 32) * 32)
    return batch if rows >= batch else rows


def _pick_cols_tile(batch, num_classes, in_isz, cmp_isz, budget_bytes=8 << 20):
    """Lanes (samples) per tile for the lane-dense [C, B] layout."""
    sublanes = _round_up(max(num_classes, 1), _SUBLANE)
    per_lane = sublanes * (2 * in_isz + 2 * cmp_isz) + 8   # + targets row
    cols = budget_bytes // max(per_lane, 1)
    cols = max(_LANE, (cols // _LANE) * _LANE)
    return batch if cols >= batch else cols


def _default_compute_dtype(in_dtype):
    """bf16 in-kernel compute only for bf16 inputs on chips with a bf16 VPU."""
    if jnp.dtype(in_dtype) != jnp.dtype(jnp.bfloat16):
        return jnp.float32
    try:
        kind = jax.devices()[0].device_kind.lower()
    except Exception:
        return jnp.float32
    # v6e / v7x have bf16 VALU; older generations (v2..v5e) do not.
    return jnp.bfloat16 if ("v6" in kind or "v7" in kind) else jnp.float32


# ----------------------------------------------------------------------------
# Wrapper
# ----------------------------------------------------------------------------
def cw_loss(logits, targets, num_classes, margin=50.0, reduce=True, *,
            num_parts=1, tile=None, layout=None, compute_dtype=None):
    """Pallas TPU implementation of CWLoss.forward.

    logits:  [B, num_classes] float array (DMA'd in its native dtype)
    targets: [B] integer class indices
    returns: scalar float32 loss

    layout: None (auto) | "rows" ([B,C] blocks, batch on sublanes)
            | "cols" (lane-dense [C,B] blocks, batch on lanes; best for small C)
    num_parts: leading "parallel" grid axis.  Leave at 1 on single-TensorCore
        chips (v5e/v6e); set 2 on v7x so both TensorCores share the HBM reads.
    """
    B, C = logits.shape
    assert C == num_classes, (C, num_classes)
    targets = targets.astype(jnp.int32)

    if compute_dtype is None:
        compute_dtype = _default_compute_dtype(logits.dtype)
    if layout is None:
        layout = "cols" if C < _LANE_DENSE_THRESHOLD else "rows"

    in_isz = jnp.dtype(logits.dtype).itemsize
    cmp_isz = jnp.dtype(compute_dtype).itemsize

    if layout == "cols":
        tl = tile if tile is not None else _pick_cols_tile(B, C, in_isz, cmp_isz)
        if tl >= B:
            tl = B
        else:
            tl = max(_LANE, (tl // _LANE) * _LANE)   # lane dim: x128 or full
        data = logits.T                  # [C, B]  (one extra pass over logits)
        aux = targets.reshape(1, B)      # lane-dense targets
        num_tiles = pl.cdiv(B, tl)
        parts = min(max(1, int(num_parts)), num_tiles)
        tiles_per_part = pl.cdiv(num_tiles, parts)

        def tile_map(p, j, _nt=num_tiles, _tpp=tiles_per_part):
            return (0, jnp.minimum(p * _tpp + j, _nt - 1))

        data_block, aux_block = (C, tl), (1, tl)
        kernel = functools.partial(
            _cw_cols_kernel, margin=float(margin), batch=B, tile_n=tl,
            tiles_per_part=tiles_per_part, compute_dtype=compute_dtype)
        padded_sub = _round_up(C, 32)
        data_block_bytes = padded_sub * tl * in_isz
        aux_block_bytes = _SUBLANE * tl * 4
        temp_bytes = 2 * padded_sub * tl * cmp_isz
    elif layout == "rows":
        tb = tile if tile is not None else _pick_rows_tile(B, C, in_isz, cmp_isz)
        if tb >= B:
            tb = B
        else:
            tb = max(_SUBLANE, (tb // _SUBLANE) * _SUBLANE)  # sublane dim: x8 or full
        data = logits
        aux = targets.reshape(B, 1)
        num_tiles = pl.cdiv(B, tb)
        parts = min(max(1, int(num_parts)), num_tiles)
        tiles_per_part = pl.cdiv(num_tiles, parts)

        def tile_map(p, j, _nt=num_tiles, _tpp=tiles_per_part):
            return (jnp.minimum(p * _tpp + j, _nt - 1), 0)

        data_block, aux_block = (tb, C), (tb, 1)
        kernel = functools.partial(
            _cw_rows_kernel, margin=float(margin), batch=B, tile_b=tb,
            tiles_per_part=tiles_per_part, compute_dtype=compute_dtype)
        padded_sub = _round_up(tb, 32)
        data_block_bytes = padded_sub * _round_up(C, _LANE) * in_isz
        aux_block_bytes = padded_sub * _LANE * 4
        temp_bytes = 2 * padded_sub * _round_up(C, _LANE) * cmp_isz
    else:
        raise ValueError(f"unknown layout: {layout!r}")

    # VMEM limit derived from the actual (padded) block footprint + headroom.
    vmem_limit = int(min(48 << 20,
                         max(16 << 20,
                             2 * (data_block_bytes + aux_block_bytes)
                             + temp_bytes + (4 << 20))))

    partials = pl.pallas_call(
        kernel,
        out_shape=jax.ShapeDtypeStruct((parts, 1), jnp.float32),
        grid=(parts, tiles_per_part),
        in_specs=[
            pl.BlockSpec(data_block, tile_map),   # logits (native dtype)
            pl.BlockSpec(aux_block, tile_map),    # targets (int32)
        ],
        out_specs=pl.BlockSpec((1, 1), lambda p, j: (p, 0),
                               memory_space=pltpu.MemorySpace.SMEM),
        compiler_params=pltpu.CompilerParams(
            dimension_semantics=("parallel", "arbitrary"),
            vmem_limit_bytes=vmem_limit),
        cost_estimate=pl.CostEstimate(
            flops=6 * B * C,
            transcendentals=0,
            bytes_accessed=B * C * in_isz + B * 4 + parts * 4),
    )(data, aux)

    loss = -jnp.sum(partials)
    if reduce:
        loss = loss / B
    return loss


def cw_loss_ref(logits, targets, num_classes, margin=50.0, reduce=True):
    """Plain-JAX reference mirroring the PyTorch forward."""
    logits = logits.astype(jnp.float32)
    onehot = jax.nn.one_hot(targets, num_classes, dtype=jnp.float32)
    self_loss = jnp.sum(onehot * logits, axis=1)
    other_loss = jnp.max((1.0 - onehot) * logits - onehot * 1000.0, axis=1)
    loss = -jnp.sum(jnp.maximum(self_loss - other_loss + margin, 0.0))
    if reduce:
        loss = loss / logits.shape[0]
    return loss


if __name__ == "__main__":
    key = jax.random.PRNGKey(0)
    k1, k2, k3, k4 = jax.random.split(key, 4)

    num_classes = 10
    batch = 8

    logits = jax.random.normal(k1, (batch, num_classes), jnp.float32) * 5.0
    targets = jax.random.randint(k2, (batch,), 0, num_classes, dtype=jnp.int32)

    # 1) small C -> auto lane-dense ("cols") path, f32, single tile.
    out = jax.block_until_ready(cw_loss(logits, targets, num_classes))
    ref = cw_loss_ref(logits, targets, num_classes)
    assert jnp.allclose(out, ref, rtol=1e-5, atol=1e-5), (out, ref)

    # 2) bf16 logits on the lane-dense path (bf16 in-kernel compute on chips
    #    with a bf16 VPU, f32 elsewhere).
    logits_bf16 = logits.astype(jnp.bfloat16)
    out_bf = jax.block_until_ready(cw_loss(logits_bf16, targets, num_classes))
    ref_bf = cw_loss_ref(logits_bf16, targets, num_classes)
    assert jnp.allclose(out_bf, ref_bf, rtol=1e-3, atol=1e-3), (out_bf, ref_bf)

    # 3) lane-dense path with several lane tiles + partial last tile.
    b3 = 300
    logits3 = jax.random.normal(k3, (b3, num_classes), jnp.float32) * 5.0
    targets3 = jax.random.randint(k4, (b3,), 0, num_classes, dtype=jnp.int32)
    out3 = jax.block_until_ready(
        cw_loss(logits3, targets3, num_classes, tile=128))
    ref3 = cw_loss_ref(logits3, targets3, num_classes)
    assert jnp.allclose(out3, ref3, rtol=1e-5, atol=1e-5), (out3, ref3)

    # 4) rows path forced on the small-C problem (multi-tile batch grid).
    out4 = jax.block_until_ready(
        cw_loss(logits3, targets3, num_classes, layout="rows", tile=64))
    assert jnp.allclose(out4, ref3, rtol=1e-5, atol=1e-5), (out4, ref3)

    # 5) rows path (auto for large C): partial last tile + ragged 2-part
    #    "parallel" split (v7x-style), non-default margin, reduce=False.
    b5, c5 = 20, 256
    logits5 = jax.random.normal(k3, (b5, c5), jnp.float32) * 5.0
    targets5 = jax.random.randint(k4, (b5,), 0, c5, dtype=jnp.int32)
    out5 = jax.block_until_ready(
        cw_loss(logits5, targets5, c5, margin=10.0, reduce=False,
                tile=8, num_parts=2))
    ref5 = cw_loss_ref(logits5, targets5, c5, margin=10.0, reduce=False)
    assert jnp.allclose(out5, ref5, rtol=1e-5, atol=1e-5), (out5, ref5)

    print("KERNEL_OK")
</pallas_src>

<mosaic_0001>
module attributes {stable_mosaic.version = 11 : i64} {
  func.func @_cw_cols_kernel(%arg0: i32, %arg1: i32, %arg2: memref<10x8xf32, #tpu.memory_space<vmem>>, %arg3: memref<1x8xi32, #tpu.memory_space<vmem>>, %arg4: memref<1x1xf32, #tpu.memory_space<smem>>) attributes {dimension_semantics = [#tpu.dimension_semantics<parallel>, #tpu.dimension_semantics<arbitrary>], iteration_bounds = array<i64: 1, 1>, scalar_prefetch = 0 : i64, scratch_operands = 0 : i64, tpu.core_type = #tpu.core_type<tc>, window_params = [{transform_indices = @transform_0, window_bounds = array<i64: 10, 8>}, {transform_indices = @transform_1, window_bounds = array<i64: 1, 8>}, {transform_indices = @transform_2, window_bounds = array<i64: 1, 1>}]} {
    %c0_i32 = arith.constant 0 : i32
    %0 = arith.cmpi eq, %arg1, %c0_i32 : i32
    %1 = arith.extui %0 : i1 to i32
    %c0_i32_0 = arith.constant 0 : i32
    %2 = arith.cmpi ne, %1, %c0_i32_0 : i32
    scf.if %2 {
      %cst_16 = arith.constant 0.000000e+00 : f32
      %c0_17 = arith.constant 0 : index
      %c0_18 = arith.constant 0 : index
      %38 = memref.load %arg4[%c0_17, %c0_18] : memref<1x1xf32, #tpu.memory_space<smem>>
      memref.store %cst_16, %arg4[%c0_17, %c0_18] : memref<1x1xf32, #tpu.memory_space<smem>>
    } else {
    }
    %c0 = arith.constant 0 : index
    %c0_1 = arith.constant 0 : index
    %3 = vector.load %arg2[%c0, %c0_1] : memref<10x8xf32, #tpu.memory_space<vmem>>, vector<10x8xf32>
    %c0_2 = arith.constant 0 : index
    %c0_3 = arith.constant 0 : index
    %4 = vector.load %arg3[%c0_2, %c0_3] : memref<1x8xi32, #tpu.memory_space<vmem>>, vector<1x8xi32>
    %5 = tpu.iota {dimensions = array<i32: 0>} : vector<10x8xi32>
    %6 = vector.broadcast %4 : vector<1x8xi32> to vector<10x8xi32>
    %7 = arith.cmpi eq, %5, %6 : vector<10x8xi32>
    %cst = arith.constant 0.000000e+00 : f32
    %8 = vector.broadcast %cst : f32 to vector<10x8xf32>
    %9 = arith.select %7, %3, %8 : vector<10x8xi1>, vector<10x8xf32>
    %cst_4 = arith.constant dense<0.000000e+00> : vector<8xf32>
    %10 = vector.multi_reduction <add>, %9, %cst_4 [0] : vector<10x8xf32> to vector<8xf32>
    %11 = vector.shape_cast %10 : vector<8xf32> to vector<1x8xf32>
    %cst_5 = arith.constant -1.000000e+03 : f32
    %12 = vector.broadcast %cst_5 : f32 to vector<10x8xf32>
    %13 = arith.select %7, %12, %3 : vector<10x8xi1>, vector<10x8xf32>
    %cst_6 = arith.constant dense<0xFF800000> : vector<8xf32>
    %14 = vector.multi_reduction <maximumf>, %13, %cst_6 [0] : vector<10x8xf32> to vector<8xf32>
    %15 = vector.shape_cast %14 : vector<8xf32> to vector<1x8xf32>
    %16 = arith.subf %11, %15 : vector<1x8xf32>
    %cst_7 = arith.constant 5.000000e+01 : f32
    %17 = vector.broadcast %cst_7 : f32 to vector<1x8xf32>
    %18 = arith.addf %16, %17 : vector<1x8xf32>
    %cst_8 = arith.constant 0.000000e+00 : f32
    %19 = vector.broadcast %cst_8 : f32 to vector<1x8xf32>
    %20 = arith.maximumf %18, %19 : vector<1x8xf32>
    %c1_i32 = arith.constant 1 : i32
    %21 = arith.muli %arg0, %c1_i32 : i32
    %22 = arith.addi %21, %arg1 : i32
    %c8_i32 = arith.constant 8 : i32
    %23 = arith.muli %22, %c8_i32 : i32
    %24 = tpu.iota {dimensions = array<i32: 1>} : vector<1x8xi32>
    %25 = vector.broadcast %23 : i32 to vector<1x8xi32>
    %26 = arith.addi %25, %24 : vector<1x8xi32>
    %c8_i32_9 = arith.constant 8 : i32
    %27 = vector.broadcast %c8_i32_9 : i32 to vector<1x8xi32>
    %28 = arith.cmpi slt, %26, %27 : vector<1x8xi32>
    %cst_10 = arith.constant 0.000000e+00 : f32
    %29 = vector.broadcast %cst_10 : f32 to vector<1x8xf32>
    %30 = arith.select %28, %20, %29 : vector<1x8xi1>, vector<1x8xf32>
    %c0_11 = arith.constant 0 : index
    %c0_12 = arith.constant 0 : index
    %31 = memref.load %arg4[%c0_11, %c0_12] : memref<1x1xf32, #tpu.memory_space<smem>>
    %32 = vector.shape_cast %30 : vector<1x8xf32> to vector<1x1x8xf32>
    %cst_13 = arith.constant dense<0.000000e+00> : vector<1xf32>
    %33 = vector.multi_reduction <add>, %32, %cst_13 [1, 2] : vector<1x1x8xf32> to vector<1xf32>
    %34 = vector.shape_cast %33 : vector<1xf32> to vector<1x1x1xf32>
    %35 = vector.extract %34[0, 0, 0] : f32 from vector<1x1x1xf32>
    %36 = arith.addf %31, %35 : f32
    %c0_14 = arith.constant 0 : index
    %c0_15 = arith.constant 0 : index
    %37 = memref.load %arg4[%c0_14, %c0_15] : memref<1x1xf32, #tpu.memory_space<smem>>
    memref.store %36, %arg4[%c0_14, %c0_15] : memref<1x1xf32, #tpu.memory_space<smem>>
    return
  }
  func.func @transform_0(%arg0: i32, %arg1: i32) -> (i32, i32) {
    %c1_i32 = arith.constant 1 : i32
    %0 = arith.muli %arg0, %c1_i32 : i32
    %1 = arith.addi %0, %arg1 : i32
    %c0_i32 = arith.constant 0 : i32
    %2 = arith.minsi %1, %c0_i32 : i32
    %c0_i32_0 = arith.constant 0 : i32
    %c0_i32_1 = arith.constant 0 : i32
    return %c0_i32_0, %2 : i32, i32
  }
  func.func @transform_1(%arg0: i32, %arg1: i32) -> (i32, i32) {
    %c1_i32 = arith.constant 1 : i32
    %0 = arith.muli %arg0, %c1_i32 : i32
    %1 = arith.addi %0, %arg1 : i32
    %c0_i32 = arith.constant 0 : i32
    %2 = arith.minsi %1, %c0_i32 : i32
    %c0_i32_0 = arith.constant 0 : i32
    %c0_i32_1 = arith.constant 0 : i32
    return %c0_i32_0, %2 : i32, i32
  }
  func.func @transform_2(%arg0: i32, %arg1: i32) -> (i32, i32) {
    %c0_i32 = arith.constant 0 : i32
    %c0_i32_0 = arith.constant 0 : i32
    return %arg0, %c0_i32 : i32, i32
  }
}

</mosaic_0001>

<llo_original>
// kernel: tpu_custom_call.1
$region0: #{tpu_custom_call.1}
  #allocation0 [shape = 'u32[]', space=smem, size = 0x4, offset = 0x4, fixed_abs, tag = 'smem constant byte address 0x4 - core index']
  #allocation1 [shape = 'u32[72,128]{1,0:T(1,128)}', space=vmem, size = 0x9000, scoped, tag = 'internal scratch']
  %s0 = inlined_call_operand.vmem [shape: f32[10,8], index: 0, kind: input, shape index: {}]
  %s1 = inlined_call_operand.vmem [shape: s32[1,8], index: 1, kind: input, shape index: {}]
  %s2 = inlined_call_operand.hbm [shape: f32[1,1], index: 2, kind: output, shape index: {}]
  %s3 = sld [smem:[#allocation0]]
  $region22: #{tpu_custom_call.1} parent=0
    _
  %s5 = ssub.s32 1, %s3
  %s6 = scalar_select 0, %s5, %s3
  $region1: #{tpu_custom_call.1} parent=0
    #allocation2 [shape = 'u8[512]{0}', space=smem, size = 0x200, scoped, tag = 'output window, operand 0, single buffered']
    #allocation3 [shape = 's32[1]{0}', space=sflag, size = 0x4, scoped, tag = 'scoped memory for tpu_custom_call.1']
    %7 = vsyncpa [#allocation3], 0
    // Predicated region
    $region2: #{tpu_custom_call.1} parent=1 // pred_check
      _
    $region3: #{tpu_custom_call.1} parent=1 // pred_check_branch
      %9 = sbr.rel (0) target = $region5
    $region4: #{tpu_custom_call.1} parent=1 // pred_region
      %s10 = sadd.s32 0, 0
      %p11 = scmp.lt.s32.totalorder %s10, 0
      %s12 = scalar_select %p11, %s10, 0
      %p13 = scmp.lt.s32.totalorder %s12, 0
      %s14 = scalar_select %p13, %s12, 0
      %s15 = smul.addr %s14, 8
      %s16 = scalar_lea.vmem %s0, %s15
      %s17 = sadd.s32 0, 0
      %p18 = scmp.lt.s32.totalorder %s17, 0
      %s19 = scalar_select %p18, %s17, 0
    $region5: #{tpu_custom_call.1} parent=1 // pred_fallthru
      _
    // Predicated region
    $region6: #{tpu_custom_call.1} parent=1 // pred_check
      _
    $region7: #{tpu_custom_call.1} parent=1 // pred_check_branch
      %21 = sbr.rel (0) target = $region9
    $region8: #{tpu_custom_call.1} parent=1 // pred_region
      %s22 = sadd.s32 0, 0
      %p23 = scmp.lt.s32.totalorder %s22, 0
      %s24 = scalar_select %p23, %s22, 0
      %p25 = scmp.lt.s32.totalorder %s24, 0
      %s26 = scalar_select %p25, %s24, 0
      %s27 = scalar_lea.vmem %s1, %s26
      %s28 = sadd.s32 0, 0
      %p29 = scmp.lt.s32.totalorder %s28, 0
      %s30 = scalar_select %p29, %s28, 0
    $region9: #{tpu_custom_call.1} parent=1 // pred_fallthru
      _
    %s31 = sadd.s32 0, 0
    %p32 = scmp.lt.s32.totalorder %s31, 0
    %s33 = scalar_select %p32, %s31, 0
    %p34 = scmp.lt.s32.totalorder %s33, 0
    %s35 = scalar_select %p34, %s33, 0
    %s36 = smul.addr %s35, 8
    %s37 = scalar_lea.vmem %s0, %s36
    %s38 = sadd.s32 0, 0
    %p39 = scmp.lt.s32.totalorder %s38, 0
    %s40 = scalar_select %p39, %s38, 0
    %p41 = scmp.lt.s32.totalorder %s40, 0
    %s42 = scalar_select %p41, %s40, 0
    %s43 = scalar_lea.vmem %s1, %s42
    %s44 = sadd.s32 0, 0
    %p45 = scmp.lt.s32.totalorder %s44, 0
    %s46 = scalar_select %p45, %s44, 0
    %p47 = scmp.lt.s32.totalorder %s46, 0
    %s48 = scalar_select %p47, %s46, 0
    %s49 = smul.addr %s48, 8
    %s50 = scalar_lea.vmem %s0, %s49
    %s51 = sadd.s32 0, 0
    %p52 = scmp.lt.s32.totalorder %s51, 0
    %s53 = scalar_select %p52, %s51, 0
    %s54 = sadd.s32 0, 0
    %p55 = scmp.lt.s32.totalorder %s54, 0
    %s56 = scalar_select %p55, %s54, 0
    %p57 = scmp.lt.s32.totalorder %s56, 0
    %s58 = scalar_select %p57, %s56, 0
    %s59 = scalar_lea.vmem %s1, %s58
    %s60 = sadd.s32 0, 0
    %p61 = scmp.lt.s32.totalorder %s60, 0
    %s62 = scalar_select %p61, %s60, 0
    %p63 = scmp.eq.s32.totalorder 0, 0
    // Predicated region
    $region10: #{tpu_custom_call.1} parent=1 // pred_check
      %p64 = pneg %p63
    $region11: #{tpu_custom_call.1} parent=1 // pred_check_branch
      %66 = sbr.rel (%p64) target = $region13
    $region12: #{tpu_custom_call.1} parent=1 // pred_region
      %s67 = scalar_lea.smem [#allocation2], 0
      %68 = sst [smem:[%s67]] 0.0
    $region13: #{tpu_custom_call.1} parent=1 // pred_fallthru
      _
    %v69 = vld [vmem:[%s50] sm:$0xff]
    %v70 = vld [vmem:[%s50 + $0x8] sm:$0x3]
    %v71 = vld [vmem:[%s59] sm:$0x1]
    %v72 = vlaneseq
    %v73 = vshrl.u32 %v72, 7
    %v74 = vadd.s32 %v73, 8
    %v75 = vperm.slane %v71, 0
    %vm76 = vcmp.eq.s32.totalorder %v73, %v75
    %vm77 = vcmp.eq.s32.totalorder %v74, %v75
    %v78 = vsel %vm76, %v69, 0.0
    %v79 = vsel %vm77, %v70, 0.0
    %vm80 = vcmask 64512
    %v81 = vsel %vm80, %v78, 0.0
    %vm82 = vcmask 58368
    %v83 = vsel %vm82, %v79, 0.0
    %v84 = vadd.f32 %v81, %v83
    %v85 = vrot.slane %v84, 4
    %v86 = vadd.f32 %v84, %v85
    %v87 = vrot.slane %v86, 2
    %v88 = vadd.f32 %v86, %v87
    %v89 = vrot.slane %v88, 1
    %v90 = vadd.f32 %v88, %v89
    %v91 = vsel %vm76, -1000.0, %v69
    %v92 = vsel %vm77, -1000.0, %v70
    %v93 = vsel %vm80, %v91, -inf
    %v94 = vsel %vm82, %v92, -inf
    %v95 = vmax.f32 %v93, %v94
    %v96 = vrot.slane %v95, 4
    %v97 = vmax.f32 %v95, %v96
    %v98 = vrot.slane %v97, 2
    %v99 = vmax.f32 %v97, %v98
    %v100 = vrot.slane %v99, 1
    %v101 = vmax.f32 %v99, %v100
    %v102 = vsub.f32 %v90, %v101
    %v103 = vadd.f32 %v102, 50.0
    %v104 = vmax.f32 %v103, 0.0
    %s105 = sadd.s32 0, 0
    %s106 = smul.u32 %s105, 8
    %v107 = vlaneseq
    %v108 = vand.u32 %v107, 127
    %v109 = vstv %s106
    %v110 = vadd.s32 %v109, %v108
    %vm111 = vcmp.lt.s32.totalorder %v110, 8
    %v112 = vsel %vm111, %v104, 0.0
    %s113 = sld [smem:[#allocation2]]
    %vm114 = vcmask 57344
    %v115 = vsel %vm114, %v112, 0.0
    %116 = vadd.xlane.f32.xlu0 %v115
    %v117 = vpop.xlane.xlu0 %116
    %v118 = vrot.slane %v117, 4
    %v119 = vadd.f32 %v117, %v118
    %v120 = vrot.slane %v119, 2
    %v121 = vadd.f32 %v119, %v120
    %v122 = vrot.slane %v121, 1
    %v123 = vadd.f32 %v121, %v122
    %s124 = vtos %v123
    %s125 = sadd.f32 %s113, %s124
    %s126 = scalar_lea.smem [#allocation2], 0
    %127 = sst [smem:[%s126]] %s125
    // Predicated region
    $region14: #{tpu_custom_call.1} parent=1 // pred_check
      _
    $region15: #{tpu_custom_call.1} parent=1 // pred_check_branch
      %129 = sbr.rel (0) target = $region17
    $region16: #{tpu_custom_call.1} parent=1 // pred_region
      %131 = vsyncadd [#allocation3], 0
      %s133 = sshll.u32 %s2, 4
      %s134 = int_to_ptr.hbm [resolvable:$true] %s133
      %136 = dma.smem_to_hbm [#allocation2], 16, %s134, [#allocation3]
    $region17: #{tpu_custom_call.1} parent=1 // pred_fallthru
      _
    // Predicated region
    $region18: #{tpu_custom_call.1} parent=1 // pred_check
      _
    $region19: #{tpu_custom_call.1} parent=1 // pred_check_branch
      %138 = sbr.rel (0) target = $region21
    $region20: #{tpu_custom_call.1} parent=1 // pred_region
      %140 = dma.done [#allocation3], 16
    $region21: #{tpu_custom_call.1} parent=1 // pred_fallthru
      _
    %141 = sfence
    %142 = vsyncpa [#allocation3], 1

</llo_original>
